<compile_context>
chip_gen: v5e
topology: v5e:2x2
jax: 0.10.0
libtpu: 0.0.40
codegen_flags: <defaults>
</compile_context>

<pallas_src>
import jax
import jax.numpy as jnp
import numpy as np
from jax.experimental import pallas as pl
from jax.experimental.pallas import tpu as pltpu


def _gelu_tanh(v):
    # 0.5 * v * (1 + tanh(sqrt(2/pi) * v * (1 + 0.044715 * v^2)))  -- f32.
    c = jnp.float32(np.sqrt(2.0 / np.pi))
    inner = (c * v) * (1.0 + 0.044715 * (v * v))
    return 0.5 * v * (1.0 + jnp.tanh(inner))


def _ffn_kernel(x_ref, w1_ref, b1_ref, w2_ref, b2_ref, o_ref, acc_ref):
    """One (row-tile, I-chunk) step of the feed-forward block.

    grid = (M // tm, I // ti); axis 1 (I chunks) is the reduction axis.
    """
    j = pl.program_id(1)

    @pl.when(j == 0)
    def _():
        # Fold b2 into the accumulator init; removes a (tm, E) f32 add from the epilogue.
        acc_ref[...] = jnp.broadcast_to(b2_ref[...], acc_ref.shape)

    # (tm, E) @ (E, ti) -> f32 (tm, ti); bias + GELU in f32.
    h = jnp.dot(x_ref[...], w1_ref[...], preferred_element_type=jnp.float32)
    h = _gelu_tanh(h + b1_ref[...])

    # (tm, ti) @ (ti, E) -> accumulate in f32.
    acc_ref[...] += jnp.dot(
        h.astype(w2_ref.dtype), w2_ref[...], preferred_element_type=jnp.float32
    )

    @pl.when(j == pl.num_programs(1) - 1)
    def _():
        o_ref[...] = acc_ref[...].astype(o_ref.dtype)


def _tpu_generation():
    """Best-effort TPU generation detection; returns 'v5e' / 'v6e' / 'v7x' / None."""
    try:
        kind = jax.devices()[0].device_kind.lower()
    except Exception:
        return None
    if "v5 lite" in kind or "v5e" in kind or "v5lite" in kind:
        return "v5e"
    if "v6" in kind:
        return "v6e"
    if "v7" in kind or "tpu7" in kind or kind.endswith("7x"):
        return "v7x"
    return None


def _pick_divisor(dim, candidates):
    for c in candidates:
        if c <= dim and dim % c == 0:
            return c
    return dim  # fall back to the full dimension (always a legal block)


def _vmem_block_bytes(tm, ti, E, out_itemsize, compute_itemsize=2):
    """Approximate live VMEM for the double-buffered block set + f32 accumulator."""
    b = 0
    b += 2 * tm * E * compute_itemsize          # x tile (x2 pipeline buffers)
    b += 2 * E * ti * compute_itemsize          # W1 column chunk
    b += 2 * ti * E * compute_itemsize          # W2 row chunk
    b += 2 * 8 * max(ti, 128) * 4               # b1 chunk (f32, sublane-padded)
    b += 2 * 8 * max(E, 128) * 4                # b2 (f32, sublane-padded)
    b += 2 * tm * E * out_itemsize              # output tile
    b += tm * E * 4                             # f32 accumulator (single buffer)
    return b


def _select_tiles(M, I, E, out_itemsize, gen):
    """Generation-aware (tm, ti) selection + physical VMEM capacity."""
    if gen == "v6e":
        tm_cands = (1024, 768, 512, 384, 256, 128)
        ti_cands = (512, 256, 128)
        vmem_cap = 128 << 20
    elif gen == "v5e":
        tm_cands = (256, 128)
        ti_cands = (512, 256, 128)
        vmem_cap = 128 << 20
    elif gen == "v7x":
        tm_cands = (512, 384, 256, 128)
        ti_cands = (512, 256, 128)
        vmem_cap = 64 << 20
    else:  # unknown generation -> conservative (v7x-like VMEM, moderate tiles)
        tm_cands = (512, 256, 128)
        ti_cands = (512, 256, 128)
        vmem_cap = 64 << 20

    tm = _pick_divisor(M, tm_cands)
    ti = _pick_divisor(I, ti_cands)

    # v7x has 2 TensorCores: ensure >= 2 row tiles on the "parallel" axis whenever a
    # legal multiple-of-8 split exists (otherwise the whole FFN runs on one TC).
    if gen == "v7x" and M // tm < 2 and M >= 16 and (M // 2) % 8 == 0:
        tm = M // 2

    # Shrink tiles until the double-buffered block set fits comfortably in VMEM.
    budget = int(0.70 * vmem_cap)
    while _vmem_block_bytes(tm, ti, E, out_itemsize) > budget:
        if ti >= 256 and (ti // 2) % 128 == 0 and I % (ti // 2) == 0:
            ti //= 2
        elif tm >= 16 and (tm // 2) % 8 == 0 and M % (tm // 2) == 0:
            tm //= 2
        else:
            break

    return tm, ti, vmem_cap


def feed_forward(x, w1, b1, w2, b2, *, compute_dtype=jnp.bfloat16, tm=None, ti=None):
    """y = GELU(x @ w1 + b1) @ w2 + b2, with w1:(E,I), w2:(I,E), b1:(I,), b2:(E,)."""
    orig_shape = x.shape
    E = orig_shape[-1]
    I = w1.shape[1]
    M = int(np.prod(orig_shape[:-1]))

    # Flatten leading (batch, seq, ...) dims into rows; free reshape at the JAX level.
    x2 = x.reshape(M, E)

    # bf16 operands for the MXU; biases stay f32 (added to the f32 accumulation).
    xc = x2.astype(compute_dtype)
    w1c = w1.astype(compute_dtype)
    w2c = w2.astype(compute_dtype)
    b1f = b1.reshape(1, I).astype(jnp.float32)
    b2f = b2.reshape(1, E).astype(jnp.float32)

    out_itemsize = jnp.dtype(x.dtype).itemsize
    gen = _tpu_generation()
    auto_tm, auto_ti, vmem_cap = _select_tiles(M, I, E, out_itemsize, gen)
    tm = auto_tm if tm is None else tm
    ti = auto_ti if ti is None else ti
    assert M % tm == 0 and I % ti == 0, "row/intermediate dims must divide their tiles"

    grid = (M // tm, I // ti)
    n_row_tiles = M // tm

    # Explicit scoped-VMEM limit sized to the real block set (+ slack), clamped to physical.
    needed = _vmem_block_bytes(tm, ti, E, out_itemsize)
    vmem_limit = int(min(int(0.9 * vmem_cap), max(needed + (8 << 20), 32 << 20)))

    itemsize = jnp.dtype(compute_dtype).itemsize
    cost = pl.CostEstimate(
        flops=4 * M * E * I,                       # two matmuls: 2*M*E*I each
        transcendentals=M * I,                     # tanh per intermediate element
        bytes_accessed=int(
            M * E * itemsize                                        # x (streamed once)
            + n_row_tiles * (E * I * itemsize + I * E * itemsize)   # W1/W2 per row tile
            + n_row_tiles * (I * 4 + E * 4)                         # biases per row tile
            + M * E * out_itemsize                                  # output
        ),
    )

    out = pl.pallas_call(
        _ffn_kernel,
        out_shape=jax.ShapeDtypeStruct((M, E), x.dtype),
        grid_spec=pltpu.PrefetchScalarGridSpec(
            num_scalar_prefetch=0,
            grid=grid,
            in_specs=[
                pl.BlockSpec((tm, E), lambda i, j: (i, 0)),   # x rows (const over j)
                pl.BlockSpec((E, ti), lambda i, j: (0, j)),   # W1 column chunk
                pl.BlockSpec((1, ti), lambda i, j: (0, j)),   # b1 chunk
                pl.BlockSpec((ti, E), lambda i, j: (j, 0)),   # W2 row chunk
                pl.BlockSpec((1, E), lambda i, j: (0, 0)),    # b2 (constant)
            ],
            out_specs=pl.BlockSpec((tm, E), lambda i, j: (i, 0)),
            scratch_shapes=[pltpu.VMEM((tm, E), jnp.float32)],  # f32 accumulator
        ),
        compiler_params=pltpu.CompilerParams(
            dimension_semantics=("parallel", "arbitrary"),
            vmem_limit_bytes=vmem_limit,
        ),
        cost_estimate=cost,
    )(xc, w1c, b1f, w2c, b2f)

    return out.reshape(orig_shape)


def feed_forward_reference(x, w1, b1, w2, b2, *, compute_dtype=jnp.bfloat16):
    """Pure-JAX mirror (same bf16-operand / f32-accumulation recipe) for validation."""
    xc = x.astype(compute_dtype)
    w1c = w1.astype(compute_dtype)
    w2c = w2.astype(compute_dtype)
    h = jnp.dot(xc, w1c, preferred_element_type=jnp.float32) + b1.astype(jnp.float32)
    h = _gelu_tanh(h)
    y = (
        jnp.dot(h.astype(compute_dtype), w2c, preferred_element_type=jnp.float32)
        + b2.astype(jnp.float32)
    )
    return y.astype(x.dtype)


if __name__ == "__main__":
    # Small config consistent with the module: batch=2, seq=8, emb_dim=128 (lane-aligned),
    # intermediate = 4 * emb_dim = 512.
    B, T, E = 2, 8, 128
    I = 4 * E

    key = jax.random.PRNGKey(0)
    k_x, k_w1, k_b1, k_w2, k_b2 = jax.random.split(key, 5)

    def w(k, shape, std=0.05):
        return jax.random.normal(k, shape, jnp.float32) * std

    x = jax.random.normal(k_x, (B, T, E), jnp.float32)
    w1 = w(k_w1, (E, I))       # (in, out) = torch weight transposed
    b1 = w(k_b1, (I,))
    w2 = w(k_w2, (I, E))
    b2 = w(k_b2, (E,))

    ref = feed_forward_reference(x, w1, b1, w2, b2)

    # 1) Auto-selected (generation-aware) tiles.
    out_auto = jax.block_until_ready(feed_forward(x, w1, b1, w2, b2))
    np.testing.assert_allclose(np.asarray(out_auto), np.asarray(ref), rtol=1e-2, atol=1e-2)

    # 2) ti=256 -> two reduction steps on the I axis, exercising init/accumulate/finalize.
    out_red = jax.block_until_ready(feed_forward(x, w1, b1, w2, b2, ti=256))
    np.testing.assert_allclose(np.asarray(out_red), np.asarray(ref), rtol=1e-2, atol=1e-2)

    print("KERNEL_OK")
</pallas_src>

<mosaic_0001>
module attributes {stable_mosaic.version = 11 : i64} {
  func.func @_ffn_kernel(%arg0: i32, %arg1: i32, %arg2: memref<16x128xbf16, #tpu.memory_space<vmem>>, %arg3: memref<128x512xbf16, #tpu.memory_space<vmem>>, %arg4: memref<1x512xf32, #tpu.memory_space<vmem>>, %arg5: memref<512x128xbf16, #tpu.memory_space<vmem>>, %arg6: memref<1x128xf32, #tpu.memory_space<vmem>>, %arg7: memref<16x128xf32, #tpu.memory_space<vmem>>, %arg8: memref<16x128xf32, #tpu.memory_space<vmem>>) attributes {dimension_semantics = [#tpu.dimension_semantics<parallel>, #tpu.dimension_semantics<arbitrary>], iteration_bounds = array<i64: 1, 1>, scalar_prefetch = 0 : i64, scratch_operands = 1 : i64, tpu.core_type = #tpu.core_type<tc>, window_params = [{transform_indices = @transform_0, window_bounds = array<i64: 16, 128>}, {transform_indices = @transform_1, window_bounds = array<i64: 128, 512>}, {transform_indices = @transform_2, window_bounds = array<i64: 1, 512>}, {transform_indices = @transform_3, window_bounds = array<i64: 512, 128>}, {pipeline_mode = #tpu.pipeline_mode<synchronous>, transform_indices = @transform_4, window_bounds = array<i64: 1, 128>}, {transform_indices = @transform_5, window_bounds = array<i64: 16, 128>}]} {
    %c0_i32 = arith.constant 0 : i32
    %0 = arith.cmpi eq, %arg1, %c0_i32 : i32
    %1 = arith.extui %0 : i1 to i32
    %c0_i32_0 = arith.constant 0 : i32
    %2 = arith.cmpi ne, %1, %c0_i32_0 : i32
    scf.if %2 {
      %c0_20 = arith.constant 0 : index
      %c0_21 = arith.constant 0 : index
      %32 = vector.load %arg6[%c0_20, %c0_21] : memref<1x128xf32, #tpu.memory_space<vmem>>, vector<1x128xf32>
      %33 = vector.shape_cast %32 : vector<1x128xf32> to vector<1x128xf32>
      %34 = vector.broadcast %33 : vector<1x128xf32> to vector<16x128xf32>
      %c0_22 = arith.constant 0 : index
      %c0_23 = arith.constant 0 : index
      %35 = vector.load %arg8[%c0_22, %c0_23] : memref<16x128xf32, #tpu.memory_space<vmem>>, vector<16x128xf32>
      tpu.vector_store %arg8[%c0_22, %c0_23], %34 {strides = array<i32>} : memref<16x128xf32, #tpu.memory_space<vmem>>, vector<16x128xf32>,
    } else {
    }
    %c0 = arith.constant 0 : index
    %c0_1 = arith.constant 0 : index
    %3 = vector.load %arg2[%c0, %c0_1] : memref<16x128xbf16, #tpu.memory_space<vmem>>, vector<16x128xbf16>
    %c0_2 = arith.constant 0 : index
    %c0_3 = arith.constant 0 : index
    %4 = vector.load %arg3[%c0_2, %c0_3] : memref<128x512xbf16, #tpu.memory_space<vmem>>, vector<128x512xbf16>
    %cst = arith.constant dense<0.000000e+00> : vector<16x512xf32>
    %5 = tpu.matmul %3, %4, %cst {dimension_numbers = #tpu.dot_dimension_numbers<[1], [0], [0], [1], [0, 0, 1, 1], [], []>} : vector<16x128xbf16>, vector<128x512xbf16>, vector<16x512xf32> -> vector<16x512xf32>
    %c0_4 = arith.constant 0 : index
    %c0_5 = arith.constant 0 : index
    %6 = vector.load %arg4[%c0_4, %c0_5] : memref<1x512xf32, #tpu.memory_space<vmem>>, vector<1x512xf32>
    %7 = vector.broadcast %6 : vector<1x512xf32> to vector<16x512xf32>
    %8 = arith.addf %5, %7 : vector<16x512xf32>
    %cst_6 = arith.constant 0.797884583 : f32
    %9 = vector.broadcast %cst_6 : f32 to vector<16x512xf32>
    %10 = arith.mulf %9, %8 : vector<16x512xf32>
    %11 = arith.mulf %8, %8 : vector<16x512xf32>
    %cst_7 = arith.constant 4.471500e-02 : f32
    %12 = vector.broadcast %cst_7 : f32 to vector<16x512xf32>
    %13 = arith.mulf %12, %11 : vector<16x512xf32>
    %cst_8 = arith.constant 1.000000e+00 : f32
    %14 = vector.broadcast %cst_8 : f32 to vector<16x512xf32>
    %15 = arith.addf %14, %13 : vector<16x512xf32>
    %16 = arith.mulf %10, %15 : vector<16x512xf32>
    %cst_9 = arith.constant 5.000000e-01 : f32
    %17 = vector.broadcast %cst_9 : f32 to vector<16x512xf32>
    %18 = arith.mulf %17, %8 : vector<16x512xf32>
    %19 = math.tanh %16 : vector<16x512xf32>
    %cst_10 = arith.constant 1.000000e+00 : f32
    %20 = vector.broadcast %cst_10 : f32 to vector<16x512xf32>
    %21 = arith.addf %20, %19 : vector<16x512xf32>
    %22 = arith.mulf %18, %21 : vector<16x512xf32>
    %c0_11 = arith.constant 0 : index
    %c0_12 = arith.constant 0 : index
    %23 = vector.load %arg8[%c0_11, %c0_12] : memref<16x128xf32, #tpu.memory_space<vmem>>, vector<16x128xf32>
    %24 = arith.truncf %22 : vector<16x512xf32> to vector<16x512xbf16>
    %c0_13 = arith.constant 0 : index
    %c0_14 = arith.constant 0 : index
    %25 = vector.load %arg5[%c0_13, %c0_14] : memref<512x128xbf16, #tpu.memory_space<vmem>>, vector<512x128xbf16>
    %cst_15 = arith.constant dense<0.000000e+00> : vector<16x128xf32>
    %26 = tpu.matmul %24, %25, %cst_15 {dimension_numbers = #tpu.dot_dimension_numbers<[1], [0], [0], [1], [0, 0, 1, 1], [], []>} : vector<16x512xbf16>, vector<512x128xbf16>, vector<16x128xf32> -> vector<16x128xf32>
    %27 = arith.addf %23, %26 : vector<16x128xf32>
    %c0_16 = arith.constant 0 : index
    %c0_17 = arith.constant 0 : index
    %28 = vector.load %arg8[%c0_16, %c0_17] : memref<16x128xf32, #tpu.memory_space<vmem>>, vector<16x128xf32>
    tpu.vector_store %arg8[%c0_16, %c0_17], %27 {strides = array<i32>} : memref<16x128xf32, #tpu.memory_space<vmem>>, vector<16x128xf32>,
    %c0_i32_18 = arith.constant 0 : i32
    %29 = arith.cmpi eq, %arg1, %c0_i32_18 : i32
    %30 = arith.extui %29 : i1 to i32
    %c0_i32_19 = arith.constant 0 : i32
    %31 = arith.cmpi ne, %30, %c0_i32_19 : i32
    scf.if %31 {
      %c0_20 = arith.constant 0 : index
      %c0_21 = arith.constant 0 : index
      %32 = vector.load %arg8[%c0_20, %c0_21] : memref<16x128xf32, #tpu.memory_space<vmem>>, vector<16x128xf32>
      %c0_22 = arith.constant 0 : index
      %c0_23 = arith.constant 0 : index
      %33 = vector.load %arg7[%c0_22, %c0_23] : memref<16x128xf32, #tpu.memory_space<vmem>>, vector<16x128xf32>
      tpu.vector_store %arg7[%c0_22, %c0_23], %32 {strides = array<i32>} : memref<16x128xf32, #tpu.memory_space<vmem>>, vector<16x128xf32>,
    } else {
    }
    return
  }
  func.func @transform_0(%arg0: i32, %arg1: i32) -> (i32, i32) {
    %c0_i32 = arith.constant 0 : i32
    %c0_i32_0 = arith.constant 0 : i32
    return %arg0, %c0_i32 : i32, i32
  }
  func.func @transform_1(%arg0: i32, %arg1: i32) -> (i32, i32) {
    %c0_i32 = arith.constant 0 : i32
    %c0_i32_0 = arith.constant 0 : i32
    return %c0_i32, %arg1 : i32, i32
  }
  func.func @transform_2(%arg0: i32, %arg1: i32) -> (i32, i32) {
    %c0_i32 = arith.constant 0 : i32
    %c0_i32_0 = arith.constant 0 : i32
    return %c0_i32, %arg1 : i32, i32
  }
  func.func @transform_3(%arg0: i32, %arg1: i32) -> (i32, i32) {
    %c0_i32 = arith.constant 0 : i32
    %c0_i32_0 = arith.constant 0 : i32
    return %arg1, %c0_i32 : i32, i32
  }
  func.func @transform_4(%arg0: i32, %arg1: i32) -> (i32, i32) {
    %c0_i32 = arith.constant 0 : i32
    %c0_i32_0 = arith.constant 0 : i32
    %c0_i32_1 = arith.constant 0 : i32
    return %c0_i32, %c0_i32_0 : i32, i32
  }
  func.func @transform_5(%arg0: i32, %arg1: i32) -> (i32, i32) {
    %c0_i32 = arith.constant 0 : i32
    %c0_i32_0 = arith.constant 0 : i32
    return %arg0, %c0_i32 : i32, i32
  }
}

</mosaic_0001>

<llo_original>
// kernel: tpu_custom_call.1
$region0: #{tpu_custom_call.1}
  #allocation0 [shape = 'u32[]', space=smem, size = 0x4, offset = 0x4, fixed_abs, tag = 'smem constant byte address 0x4 - core index']
  #allocation1 [shape = 'u32[72,128]{1,0:T(1,128)}', space=vmem, size = 0x9000, scoped, tag = 'internal scratch']
  #allocation2 [shape = 'f32[16,128]{1,0:T(8,128)}', space=vmem, size = 0x2000, scoped, tag = 'scratch operand']
  %s0 = inlined_call_operand.hbm [shape: bf16[16,128], index: 0, kind: input, shape index: {}]
  %s1 = inlined_call_operand.hbm [shape: bf16[128,512], index: 1, kind: input, shape index: {}]
  %s2 = inlined_call_operand.hbm [shape: f32[1,512], index: 2, kind: input, shape index: {}]
  %s3 = inlined_call_operand.hbm [shape: bf16[512,128], index: 3, kind: input, shape index: {}]
  %s4 = inlined_call_operand.vmem [shape: f32[1,128], index: 4, kind: input, shape index: {}]
  %s5 = inlined_call_operand.hbm [shape: f32[16,128], index: 5, kind: output, shape index: {}]
  %s6 = sld [smem:[#allocation0]]
  $region54: #{tpu_custom_call.1} parent=0
    _
  %s8 = ssub.s32 1, %s6
  %s9 = scalar_select 0, %s8, %s6
  $region1: #{tpu_custom_call.1} parent=0
    #allocation3 [shape = 'u8[4096]{0}', space=vmem, size = 0x1000, scoped, tag = 'input window, operand 0, single buffered']
    #allocation4 [shape = 's32[1]{0}', space=sflag, size = 0x4, scoped, tag = 'scoped memory for tpu_custom_call.1']
    #allocation5 [shape = 's32[1]{0}', space=sflag, size = 0x4, scoped, tag = 'scoped memory for tpu_custom_call.1']
    #allocation6 [shape = 'u8[131072]{0}', space=vmem, size = 0x20000, scoped, tag = 'input window, operand 1, single buffered']
    #allocation7 [shape = 's32[1]{0}', space=sflag, size = 0x4, scoped, tag = 'scoped memory for tpu_custom_call.1']
    #allocation8 [shape = 'u8[2048]{0}', space=vmem, size = 0x800, scoped, tag = 'input window, operand 2, single buffered']
    #allocation9 [shape = 'u8[131072]{0}', space=vmem, size = 0x20000, scoped, tag = 'input window, operand 3, single buffered']
    #allocation10 [shape = 's32[1]{0}', space=sflag, size = 0x4, scoped, tag = 'scoped memory for tpu_custom_call.1']
    #allocation11 [shape = 'u8[8192]{0}', space=vmem, size = 0x2000, scoped, tag = 'output window, operand 0, single buffered']
    %10 = vsyncpa [#allocation4], 0
    %11 = vsyncpa [#allocation7], 0
    %12 = vsyncpa [#allocation10], 0
    %13 = vsyncpa [#allocation5], 0
    // Predicated region
    $region2: #{tpu_custom_call.1} parent=1 // pred_check
      _
    $region3: #{tpu_custom_call.1} parent=1 // pred_check_branch
      %15 = sbr.rel (0) target = $region5
    $region4: #{tpu_custom_call.1} parent=1 // pred_region
      %17 = vsyncadd [#allocation4], 0
      %s18 = sshll.u32 %s0, 4
      %s19 = int_to_ptr.hbm [resolvable:$true] %s18
      %s20 = sshll.u32 [#allocation3], 4
      %s21 = int_to_ptr.vmem [resolvable:$true] %s20
      %26 = dma.hbm_to_vmem [thread:$0]  %s19, 128, %s21, [#allocation4], 64, 64, 4
    $region5: #{tpu_custom_call.1} parent=1 // pred_fallthru
      _
    // Predicated region
    $region6: #{tpu_custom_call.1} parent=1 // pred_check
      _
    $region7: #{tpu_custom_call.1} parent=1 // pred_check_branch
      %28 = sbr.rel (0) target = $region9
    $region8: #{tpu_custom_call.1} parent=1 // pred_region
      %30 = vsyncadd [#allocation7], 0
      %s31 = sshll.u32 %s1, 4
      %s32 = int_to_ptr.hbm [resolvable:$true] %s31
      %s33 = sshll.u32 [#allocation6], 4
      %s34 = int_to_ptr.vmem [resolvable:$true] %s33
      %39 = dma.hbm_to_vmem [thread:$0]  %s32, 4096, %s34, [#allocation7], 256, 256, 16
    $region9: #{tpu_custom_call.1} parent=1 // pred_fallthru
      _
    // Predicated region
    $region10: #{tpu_custom_call.1} parent=1 // pred_check
      _
    $region11: #{tpu_custom_call.1} parent=1 // pred_check_branch
      %41 = sbr.rel (0) target = $region13
    $region12: #{tpu_custom_call.1} parent=1 // pred_region
      %43 = vsyncadd [#allocation7], 0
      %s45 = sshll.u32 %s2, 4
      %s46 = int_to_ptr.hbm [resolvable:$true] %s45
      %s47 = sshll.u32 [#allocation8], 4
      %s48 = int_to_ptr.vmem [resolvable:$true] %s47
      %50 = dma.hbm_to_vmem [thread:$0]  %s46, 64, %s48, [#allocation7]
    $region13: #{tpu_custom_call.1} parent=1 // pred_fallthru
      _
    // Predicated region
    $region14: #{tpu_custom_call.1} parent=1 // pred_check
      _
    $region15: #{tpu_custom_call.1} parent=1 // pred_check_branch
      %52 = sbr.rel (0) target = $region17
    $region16: #{tpu_custom_call.1} parent=1 // pred_region
      %54 = vsyncadd [#allocation10], 0
      %s55 = sshll.u32 %s3, 4
      %s56 = int_to_ptr.hbm [resolvable:$true] %s55
      %s57 = sshll.u32 [#allocation9], 4
      %s58 = int_to_ptr.vmem [resolvable:$true] %s57
      %63 = dma.hbm_to_vmem [thread:$0]  %s56, 4096, %s58, [#allocation10], 64, 64, 4
    $region17: #{tpu_custom_call.1} parent=1 // pred_fallthru
      _
    // Predicated region
    $region18: #{tpu_custom_call.1} parent=1 // pred_check
      _
    $region19: #{tpu_custom_call.1} parent=1 // pred_check_branch
      %65 = sbr.rel (0) target = $region21
    $region20: #{tpu_custom_call.1} parent=1 // pred_region
      _
    $region21: #{tpu_custom_call.1} parent=1 // pred_fallthru
      _
    // Predicated region
    $region22: #{tpu_custom_call.1} parent=1 // pred_check
      _
    $region23: #{tpu_custom_call.1} parent=1 // pred_check_branch
      %67 = sbr.rel (0) target = $region25
    $region24: #{tpu_custom_call.1} parent=1 // pred_region
      %69 = dma.done [#allocation4], 128
    $region25: #{tpu_custom_call.1} parent=1 // pred_fallthru
      _
    // Predicated region
    $region26: #{tpu_custom_call.1} parent=1 // pred_check
      _
    $region27: #{tpu_custom_call.1} parent=1 // pred_check_branch
      %71 = sbr.rel (0) target = $region29
    $region28: #{tpu_custom_call.1} parent=1 // pred_region
      %73 = dma.done [#allocation7], 4096
    $region29: #{tpu_custom_call.1} parent=1 // pred_fallthru
      _
    // Predicated region
    $region30: #{tpu_custom_call.1} parent=1 // pred_check
      _
    $region31: #{tpu_custom_call.1} parent=1 // pred_check_branch
      %75 = sbr.rel (0) target = $region33
    $region32: #{tpu_custom_call.1} parent=1 // pred_region
      %77 = dma.done [#allocation7], 64
    $region33: #{tpu_custom_call.1} parent=1 // pred_fallthru
      _
    // Predicated region
    $region34: #{tpu_custom_call.1} parent=1 // pred_check
      _
    $region35: #{tpu_custom_call.1} parent=1 // pred_check_branch
      %79 = sbr.rel (0) target = $region37
    $region36: #{tpu_custom_call.1} parent=1 // pred_region
      %81 = dma.done [#allocation10], 4096
    $region37: #{tpu_custom_call.1} parent=1 // pred_fallthru
      _
    %p82 = scmp.eq.s32.totalorder 0, 0
    // Predicated region
    $region38: #{tpu_custom_call.1} parent=1 // pred_check
      %p83 = pneg %p82
    $region39: #{tpu_custom_call.1} parent=1 // pred_check_branch
      %85 = sbr.rel (%p83) target = $region41
    $region40: #{tpu_custom_call.1} parent=1 // pred_region
      %v86 = vld [vmem:[%s4] sm:$0x1]
      %v88 = vperm.slane %v86, 0
      %90 = vst [vmem:[#allocation2] sm:$0xff] %v88
      %91 = vst [vmem:[#allocation2 + $0x8] sm:$0xff] %v88
    $region41: #{tpu_custom_call.1} parent=1 // pred_fallthru
      _
    %v92 = vld [vmem:[#allocation3] sm:$0xf]
    %v93 = vld [vmem:[#allocation3 + $0x4] sm:$0xf]
    %v94 = vld [vmem:[#allocation6] sm:$0xff]
    %v95 = vld [vmem:[#allocation6 + $0x8] sm:$0xff]
    %v96 = vld [vmem:[#allocation6 + $0x10] sm:$0xff]
    %v97 = vld [vmem:[#allocation6 + $0x18] sm:$0xff]
    %v98 = vld [vmem:[#allocation6 + $0x20] sm:$0xff]
    %v99 = vld [vmem:[#allocation6 + $0x28] sm:$0xff]
    %v100 = vld [vmem:[#allocation6 + $0x30] sm:$0xff]
    %v101 = vld [vmem:[#allocation6 + $0x38] sm:$0xff]
    %v102 = vld [vmem:[#allocation6 + $0x40] sm:$0xff]
    %v103 = vld [vmem:[#allocation6 + $0x48] sm:$0xff]
    %v104 = vld [vmem:[#allocation6 + $0x50] sm:$0xff]
    %v105 = vld [vmem:[#allocation6 + $0x58] sm:$0xff]
    %v106 = vld [vmem:[#allocation6 + $0x60] sm:$0xff]
    %v107 = vld [vmem:[#allocation6 + $0x68] sm:$0xff]
    %v108 = vld [vmem:[#allocation6 + $0x70] sm:$0xff]
    %v109 = vld [vmem:[#allocation6 + $0x78] sm:$0xff]
    %v110 = vld [vmem:[#allocation6 + $0x80] sm:$0xff]
    %v111 = vld [vmem:[#allocation6 + $0x88] sm:$0xff]
    %v112 = vld [vmem:[#allocation6 + $0x90] sm:$0xff]
    %v113 = vld [vmem:[#allocation6 + $0x98] sm:$0xff]
    %v114 = vld [vmem:[#allocation6 + $0xa0] sm:$0xff]
    %v115 = vld [vmem:[#allocation6 + $0xa8] sm:$0xff]
    %v116 = vld [vmem:[#allocation6 + $0xb0] sm:$0xff]
    %v117 = vld [vmem:[#allocation6 + $0xb8] sm:$0xff]
    %v118 = vld [vmem:[#allocation6 + $0xc0] sm:$0xff]
    %v119 = vld [vmem:[#allocation6 + $0xc8] sm:$0xff]
    %v120 = vld [vmem:[#allocation6 + $0xd0] sm:$0xff]
    %v121 = vld [vmem:[#allocation6 + $0xd8] sm:$0xff]
    %v122 = vld [vmem:[#allocation6 + $0xe0] sm:$0xff]
    %v123 = vld [vmem:[#allocation6 + $0xe8] sm:$0xff]
    %v124 = vld [vmem:[#allocation6 + $0xf0] sm:$0xff]
    %v125 = vld [vmem:[#allocation6 + $0xf8] sm:$0xff]
    %v126 = vld [vmem:[#allocation8] sm:$0xf]
    %v128 = vperm.slane %v126, 0
    %v129 = vperm.slane %v126, 1
    %v130 = vperm.slane %v126, 2
    %v131 = vperm.slane %v126, 3
    %v138 = vunpack.c.l.b16 %v92
    %v139 = vunpack.c.l.b16 %v93
    %v140 = vpack.c.b16 %v139, %v138
    %v174 = vunpack.c.l.b16 %v94
    %v175 = vunpack.c.h.b16 %v94
    %v176 = vunpack.c.l.b16 %v95
    %v177 = vunpack.c.h.b16 %v95
    %v178 = vunpack.c.l.b16 %v96
    %v179 = vunpack.c.h.b16 %v96
    %v180 = vunpack.c.l.b16 %v97
    %v181 = vunpack.c.h.b16 %v97
    %v182 = vunpack.c.l.b16 %v98
    %v183 = vunpack.c.h.b16 %v98
    %v184 = vunpack.c.l.b16 %v99
    %v185 = vunpack.c.h.b16 %v99
    %v186 = vunpack.c.l.b16 %v100
    %v187 = vunpack.c.h.b16 %v100
    %v188 = vunpack.c.l.b16 %v101
    %v189 = vunpack.c.h.b16 %v101
    %v190 = vunpack.c.l.b16 %v102
    %v191 = vunpack.c.h.b16 %v102
    %v192 = vunpack.c.l.b16 %v103
    %v193 = vunpack.c.h.b16 %v103
    %v194 = vunpack.c.l.b16 %v104
    %v195 = vunpack.c.h.b16 %v104
    %v196 = vunpack.c.l.b16 %v105
    %v197 = vunpack.c.h.b16 %v105
    %v198 = vunpack.c.l.b16 %v106
    %v199 = vunpack.c.h.b16 %v106
    %v200 = vunpack.c.l.b16 %v107
    %v201 = vunpack.c.h.b16 %v107
    %v202 = vunpack.c.l.b16 %v108
    %v203 = vunpack.c.h.b16 %v108
    %v204 = vunpack.c.l.b16 %v109
    %v205 = vunpack.c.h.b16 %v109
    %v206 = vunpack.c.l.b16 %v110
    %v207 = vunpack.c.h.b16 %v110
    %v208 = vunpack.c.l.b16 %v111
    %v209 = vunpack.c.h.b16 %v111
    %v210 = vunpack.c.l.b16 %v112
    %v211 = vunpack.c.h.b16 %v112
    %v212 = vunpack.c.l.b16 %v113
    %v213 = vunpack.c.h.b16 %v113
    %v214 = vunpack.c.l.b16 %v114
    %v215 = vunpack.c.h.b16 %v114
    %v216 = vunpack.c.l.b16 %v115
    %v217 = vunpack.c.h.b16 %v115
    %v218 = vunpack.c.l.b16 %v116
    %v219 = vunpack.c.h.b16 %v116
    %v220 = vunpack.c.l.b16 %v117
    %v221 = vunpack.c.h.b16 %v117
    %v222 = vunpack.c.l.b16 %v118
    %v223 = vunpack.c.h.b16 %v118
    %v224 = vunpack.c.l.b16 %v119
    %v225 = vunpack.c.h.b16 %v119
    %v226 = vunpack.c.l.b16 %v120
    %v227 = vunpack.c.h.b16 %v120
    %v228 = vunpack.c.l.b16 %v121
    %v229 = vunpack.c.h.b16 %v121
    %v230 = vunpack.c.l.b16 %v122
    %v231 = vunpack.c.h.b16 %v122
    %v232 = vunpack.c.l.b16 %v123
    %v233 = vunpack.c.h.b16 %v123
    %v234 = vunpack.c.l.b16 %v124
    %v235 = vunpack.c.h.b16 %v124
    %v236 = vunpack.c.l.b16 %v125
    %v237 = vunpack.c.h.b16 %v125
    %v238 = vpack.c.b16 %v178, %v174
    %v239 = vpack.c.b16 %v179, %v175
    %v240 = vpack.c.b16 %v180, %v176
    %v241 = vpack.c.b16 %v181, %v177
    %v242 = vpack.c.b16 %v186, %v182
    %v243 = vpack.c.b16 %v187, %v183
    %v244 = vpack.c.b16 %v188, %v184
    %v245 = vpack.c.b16 %v189, %v185
    %v246 = vpack.c.b16 %v194, %v190
    %v247 = vpack.c.b16 %v195, %v191
    %v248 = vpack.c.b16 %v196, %v192
    %v249 = vpack.c.b16 %v197, %v193
    %v250 = vpack.c.b16 %v202, %v198
    %v251 = vpack.c.b16 %v203, %v199
    %v252 = vpack.c.b16 %v204, %v200
    %v253 = vpack.c.b16 %v205, %v201
    %v254 = vpack.c.b16 %v210, %v206
    %v255 = vpack.c.b16 %v211, %v207
    %v256 = vpack.c.b16 %v212, %v208
    %v257 = vpack.c.b16 %v213, %v209
    %v258 = vpack.c.b16 %v218, %v214
    %v259 = vpack.c.b16 %v219, %v215
    %v260 = vpack.c.b16 %v220, %v216
    %v261 = vpack.c.b16 %v221, %v217
    %v262 = vpack.c.b16 %v226, %v222
    %v263 = vpack.c.b16 %v227, %v223
    %v264 = vpack.c.b16 %v228, %v224
    %v265 = vpack.c.b16 %v229, %v225
    %v266 = vpack.c.b16 %v234, %v230
    %v267 = vpack.c.b16 %v235, %v231
    %v268 = vpack.c.b16 %v236, %v232
    %v269 = vpack.c.b16 %v237, %v233
    %302 = vmatpush.bf16.msra.mxu0 %v266
    %303 = vmatpush.bf16.msra.mxu0 %v262
    %304 = vmatpush.bf16.msra.mxu0 %v258
    %305 = vmatpush.bf16.msra.mxu0 %v254
    %306 = vmatpush.bf16.msra.mxu0 %v250
    %307 = vmatpush.bf16.msra.mxu0 %v246
    %308 = vmatpush.bf16.msra.mxu0 %v242
    %309 = vmatpush.bf16.msra.mxu0 %v238
    %310 = vmatmul.bf16.gmra.mxu0 %v140
    %v311 = vpop.f32.mrf.mxu0
    %v312 = vadd.f32 %v128, %v311
    %v313 = vpop.f32.mrf.mxu0
    %v314 = vadd.f32 %v128, %v313
    %315 = vdwg.mxu0
    %316 = vmatpush.bf16.msra.mxu0 %v267
    %317 = vmatpush.bf16.msra.mxu0 %v263
    %318 = vmatpush.bf16.msra.mxu0 %v259
    %319 = vmatpush.bf16.msra.mxu0 %v255
    %320 = vmatpush.bf16.msra.mxu0 %v251
    %321 = vmatpush.bf16.msra.mxu0 %v247
    %322 = vmatpush.bf16.msra.mxu0 %v243
    %323 = vmatpush.bf16.msra.mxu0 %v239
    %324 = vmatmul.bf16.gmra.mxu0 %v140
    %v325 = vpop.f32.mrf.mxu0
    %v326 = vadd.f32 %v129, %v325
    %v327 = vpop.f32.mrf.mxu0
    %v328 = vadd.f32 %v129, %v327
    %329 = vdwg.mxu0
    %330 = vmatpush.bf16.msra.mxu0 %v268
    %331 = vmatpush.bf16.msra.mxu0 %v264
    %332 = vmatpush.bf16.msra.mxu0 %v260
    %333 = vmatpush.bf16.msra.mxu0 %v256
    %334 = vmatpush.bf16.msra.mxu0 %v252
    %335 = vmatpush.bf16.msra.mxu0 %v248
    %336 = vmatpush.bf16.msra.mxu0 %v244
    %337 = vmatpush.bf16.msra.mxu0 %v240
    %338 = vmatmul.bf16.gmra.mxu0 %v140
    %v339 = vpop.f32.mrf.mxu0
    %v340 = vadd.f32 %v130, %v339
    %v341 = vpop.f32.mrf.mxu0
    %v342 = vadd.f32 %v130, %v341
    %343 = vdwg.mxu0
    %344 = vmatpush.bf16.msra.mxu0 %v269
    %345 = vmatpush.bf16.msra.mxu0 %v265
    %346 = vmatpush.bf16.msra.mxu0 %v261
    %347 = vmatpush.bf16.msra.mxu0 %v257
    %348 = vmatpush.bf16.msra.mxu0 %v253
    %349 = vmatpush.bf16.msra.mxu0 %v249
    %350 = vmatpush.bf16.msra.mxu0 %v245
    %351 = vmatpush.bf16.msra.mxu0 %v241
    %352 = vmatmul.bf16.gmra.mxu0 %v140
    %v353 = vpop.f32.mrf.mxu0
    %v354 = vadd.f32 %v131, %v353
    %v355 = vpop.f32.mrf.mxu0
    %v356 = vadd.f32 %v131, %v355
    %357 = vdwg.mxu0
    %v358 = vmul.f32 %v312, 0.7978846
    %v359 = vmul.f32 %v326, 0.7978846
    %v360 = vmul.f32 %v340, 0.7978846
    %v361 = vmul.f32 %v354, 0.7978846
    %v362 = vmul.f32 %v314, 0.7978846
    %v363 = vmul.f32 %v328, 0.7978846
    %v364 = vmul.f32 %v342, 0.7978846
    %v365 = vmul.f32 %v356, 0.7978846
    %v366 = vmul.f32 %v312, %v312
    %v367 = vmul.f32 %v326, %v326
    %v368 = vmul.f32 %v340, %v340
    %v369 = vmul.f32 %v354, %v354
    %v370 = vmul.f32 %v314, %v314
    %v371 = vmul.f32 %v328, %v328
    %v372 = vmul.f32 %v342, %v342
    %v373 = vmul.f32 %v356, %v356
    %v374 = vmul.f32 %v366, 0.044715
    %v375 = vmul.f32 %v367, 0.044715
    %v376 = vmul.f32 %v368, 0.044715
    %v377 = vmul.f32 %v369, 0.044715
    %v378 = vmul.f32 %v370, 0.044715
    %v379 = vmul.f32 %v371, 0.044715
    %v380 = vmul.f32 %v372, 0.044715
    %v381 = vmul.f32 %v373, 0.044715
    %v382 = vadd.f32 %v374, 1.0
    %v383 = vadd.f32 %v375, 1.0
    %v384 = vadd.f32 %v376, 1.0
    %v385 = vadd.f32 %v377, 1.0
    %v386 = vadd.f32 %v378, 1.0
    %v387 = vadd.f32 %v379, 1.0
    %v388 = vadd.f32 %v380, 1.0
    %v389 = vadd.f32 %v381, 1.0
    %v390 = vmul.f32 %v358, %v382
    %v391 = vmul.f32 %v359, %v383
    %v392 = vmul.f32 %v360, %v384
    %v393 = vmul.f32 %v361, %v385
    %v394 = vmul.f32 %v362, %v386
    %v395 = vmul.f32 %v363, %v387
    %v396 = vmul.f32 %v364, %v388
    %v397 = vmul.f32 %v365, %v389
    %v398 = vmul.f32 %v312, 0.5
    %v399 = vmul.f32 %v326, 0.5
    %v400 = vmul.f32 %v340, 0.5
    %v401 = vmul.f32 %v354, 0.5
    %v402 = vmul.f32 %v314, 0.5
    %v403 = vmul.f32 %v328, 0.5
    %v404 = vmul.f32 %v342, 0.5
    %v405 = vmul.f32 %v356, 0.5
    %v406 = vtanh.pop %v390
    %v407 = vtanh.pop %v391
    %v408 = vtanh.pop %v392
    %v409 = vtanh.pop %v393
    %v410 = vtanh.pop %v394
    %v411 = vtanh.pop %v395
    %v412 = vtanh.pop %v396
    %v413 = vtanh.pop %v397
    %v414 = vadd.f32 %v406, 1.0
    %v415 = vadd.f32 %v407, 1.0
    %v416 = vadd.f32 %v408, 1.0
    %v417 = vadd.f32 %v409, 1.0
    %v418 = vadd.f32 %v410, 1.0
    %v419 = vadd.f32 %v411, 1.0
    %v420 = vadd.f32 %v412, 1.0
    %v421 = vadd.f32 %v413, 1.0
    %v422 = vmul.f32 %v398, %v414
    %v423 = vmul.f32 %v399, %v415
    %v424 = vmul.f32 %v400, %v416
    %v425 = vmul.f32 %v401, %v417
    %v426 = vmul.f32 %v402, %v418
    %v427 = vmul.f32 %v403, %v419
    %v428 = vmul.f32 %v404, %v420
    %v429 = vmul.f32 %v405, %v421
    %v430 = vld [vmem:[#allocation2] sm:$0xff]
    %v431 = vld [vmem:[#allocation2 + $0x8] sm:$0xff]
    %v432 = vpack.c.bf16 %v426, %v422
    %v433 = vpack.c.bf16 %v427, %v423
    %v434 = vpack.c.bf16 %v428, %v424
    %v435 = vpack.c.bf16 %v429, %v425
    %v436 = vld [vmem:[#allocation9] sm:$0xf]
    %v437 = vld [vmem:[#allocation9 + $0x4] sm:$0xf]
    %v438 = vld [vmem:[#allocation9 + $0x8] sm:$0xf]
    %v439 = vld [vmem:[#allocation9 + $0xc] sm:$0xf]
    %v440 = vld [vmem:[#allocation9 + $0x10] sm:$0xf]
    %v441 = vld [vmem:[#allocation9 + $0x14] sm:$0xf]
    %v442 = vld [vmem:[#allocation9 + $0x18] sm:$0xf]
    %v443 = vld [vmem:[#allocation9 + $0x1c] sm:$0xf]
    %v444 = vld [vmem:[#allocation9 + $0x20] sm:$0xf]
    %v445 = vld [vmem:[#allocation9 + $0x24] sm:$0xf]
    %v446 = vld [vmem:[#allocation9 + $0x28] sm:$0xf]
    %v447 = vld [vmem:[#allocation9 + $0x2c] sm:$0xf]
    %v448 = vld [vmem:[#allocation9 + $0x30] sm:$0xf]
    %v449 = vld [vmem:[#allocation9 + $0x34] sm:$0xf]
    %v450 = vld [vmem:[#allocation9 + $0x38] sm:$0xf]
    %v451 = vld [vmem:[#allocation9 + $0x3c] sm:$0xf]
    %v452 = vld [vmem:[#allocation9 + $0x40] sm:$0xf]
    %v453 = vld [vmem:[#allocation9 + $0x44] sm:$0xf]
    %v454 = vld [vmem:[#allocation9 + $0x48] sm:$0xf]
    %v455 = vld [vmem:[#allocation9 + $0x4c] sm:$0xf]
    %v456 = vld [vmem:[#allocation9 + $0x50] sm:$0xf]
    %v457 = vld [vmem:[#allocation9 + $0x54] sm:$0xf]
    %v458 = vld [vmem:[#allocation9 + $0x58] sm:$0xf]
    %v459 = vld [vmem:[#allocation9 + $0x5c] sm:$0xf]
    %v460 = vld [vmem:[#allocation9 + $0x60] sm:$0xf]
    %v461 = vld [vmem:[#allocation9 + $0x64] sm:$0xf]
    %v462 = vld [vmem:[#allocation9 + $0x68] sm:$0xf]
    %v463 = vld [vmem:[#allocation9 + $0x6c] sm:$0xf]
    %v464 = vld [vmem:[#allocation9 + $0x70] sm:$0xf]
    %v465 = vld [vmem:[#allocation9 + $0x74] sm:$0xf]
    %v466 = vld [vmem:[#allocation9 + $0x78] sm:$0xf]
    %v467 = vld [vmem:[#allocation9 + $0x7c] sm:$0xf]
    %v468 = vld [vmem:[#allocation9 + $0x80] sm:$0xf]
    %v469 = vld [vmem:[#allocation9 + $0x84] sm:$0xf]
    %v470 = vld [vmem:[#allocation9 + $0x88] sm:$0xf]
    %v471 = vld [vmem:[#allocation9 + $0x8c] sm:$0xf]
    %v472 = vld [vmem:[#allocation9 + $0x90] sm:$0xf]
    %v473 = vld [vmem:[#allocation9 + $0x94] sm:$0xf]
    %v474 = vld [vmem:[#allocation9 + $0x98] sm:$0xf]
    %v475 = vld [vmem:[#allocation9 + $0x9c] sm:$0xf]
    %v476 = vld [vmem:[#allocation9 + $0xa0] sm:$0xf]
    %v477 = vld [vmem:[#allocation9 + $0xa4] sm:$0xf]
    %v478 = vld [vmem:[#allocation9 + $0xa8] sm:$0xf]
    %v479 = vld [vmem:[#allocation9 + $0xac] sm:$0xf]
    %v480 = vld [vmem:[#allocation9 + $0xb0] sm:$0xf]
    %v481 = vld [vmem:[#allocation9 + $0xb4] sm:$0xf]
    %v482 = vld [vmem:[#allocation9 + $0xb8] sm:$0xf]
    %v483 = vld [vmem:[#allocation9 + $0xbc] sm:$0xf]
    %v484 = vld [vmem:[#allocation9 + $0xc0] sm:$0xf]
    %v485 = vld [vmem:[#allocation9 + $0xc4] sm:$0xf]
    %v486 = vld [vmem:[#allocation9 + $0xc8] sm:$0xf]
    %v487 = vld [vmem:[#allocation9 + $0xcc] sm:$0xf]
    %v488 = vld [vmem:[#allocation9 + $0xd0] sm:$0xf]
    %v489 = vld [vmem:[#allocation9 + $0xd4] sm:$0xf]
    %v490 = vld [vmem:[#allocation9 + $0xd8] sm:$0xf]
    %v491 = vld [vmem:[#allocation9 + $0xdc] sm:$0xf]
    %v492 = vld [vmem:[#allocation9 + $0xe0] sm:$0xf]
    %v493 = vld [vmem:[#allocation9 + $0xe4] sm:$0xf]
    %v494 = vld [vmem:[#allocation9 + $0xe8] sm:$0xf]
    %v495 = vld [vmem:[#allocation9 + $0xec] sm:$0xf]
    %v496 = vld [vmem:[#allocation9 + $0xf0] sm:$0xf]
    %v497 = vld [vmem:[#allocation9 + $0xf4] sm:$0xf]
    %v498 = vld [vmem:[#allocation9 + $0xf8] sm:$0xf]
    %v499 = vld [vmem:[#allocation9 + $0xfc] sm:$0xf]
    %v564 = vunpack.c.l.b16 %v436
    %v565 = vunpack.c.l.b16 %v437
    %v566 = vunpack.c.l.b16 %v438
    %v567 = vunpack.c.l.b16 %v439
    %v568 = vunpack.c.l.b16 %v440
    %v569 = vunpack.c.l.b16 %v441
    %v570 = vunpack.c.l.b16 %v442
    %v571 = vunpack.c.l.b16 %v443
    %v572 = vunpack.c.l.b16 %v444
    %v573 = vunpack.c.l.b16 %v445
    %v574 = vunpack.c.l.b16 %v446
    %v575 = vunpack.c.l.b16 %v447
    %v576 = vunpack.c.l.b16 %v448
    %v577 = vunpack.c.l.b16 %v449
    %v578 = vunpack.c.l.b16 %v450
    %v579 = vunpack.c.l.b16 %v451
    %v580 = vunpack.c.l.b16 %v452
    %v581 = vunpack.c.l.b16 %v453
    %v582 = vunpack.c.l.b16 %v454
    %v583 = vunpack.c.l.b16 %v455
    %v584 = vunpack.c.l.b16 %v456
    %v585 = vunpack.c.l.b16 %v457
    %v586 = vunpack.c.l.b16 %v458
    %v587 = vunpack.c.l.b16 %v459
    %v588 = vunpack.c.l.b16 %v460
    %v589 = vunpack.c.l.b16 %v461
    %v590 = vunpack.c.l.b16 %v462
    %v591 = vunpack.c.l.b16 %v463
    %v592 = vunpack.c.l.b16 %v464
    %v593 = vunpack.c.l.b16 %v465
    %v594 = vunpack.c.l.b16 %v466
    %v595 = vunpack.c.l.b16 %v467
    %v596 = vunpack.c.l.b16 %v468
    %v597 = vunpack.c.l.b16 %v469
    %v598 = vunpack.c.l.b16 %v470
    %v599 = vunpack.c.l.b16 %v471
    %v600 = vunpack.c.l.b16 %v472
    %v601 = vunpack.c.l.b16 %v473
    %v602 = vunpack.c.l.b16 %v474
    %v603 = vunpack.c.l.b16 %v475
    %v604 = vunpack.c.l.b16 %v476
    %v605 = vunpack.c.l.b16 %v477
    %v606 = vunpack.c.l.b16 %v478
    %v607 = vunpack.c.l.b16 %v479
    %v608 = vunpack.c.l.b16 %v480
    %v609 = vunpack.c.l.b16 %v481
    %v610 = vunpack.c.l.b16 %v482
    %v611 = vunpack.c.l.b16 %v483
    %v612 = vunpack.c.l.b16 %v484
    %v613 = vunpack.c.l.b16 %v485
    %v614 = vunpack.c.l.b16 %v486
    %v615 = vunpack.c.l.b16 %v487
    %v616 = vunpack.c.l.b16 %v488
    %v617 = vunpack.c.l.b16 %v489
    %v618 = vunpack.c.l.b16 %v490
    %v619 = vunpack.c.l.b16 %v491
    %v620 = vunpack.c.l.b16 %v492
    %v621 = vunpack.c.l.b16 %v493
    %v622 = vunpack.c.l.b16 %v494
    %v623 = vunpack.c.l.b16 %v495
    %v624 = vunpack.c.l.b16 %v496
    %v625 = vunpack.c.l.b16 %v497
    %v626 = vunpack.c.l.b16 %v498
    %v627 = vunpack.c.l.b16 %v499
    %v628 = vpack.c.b16 %v565, %v564
    %v629 = vpack.c.b16 %v567, %v566
    %v630 = vpack.c.b16 %v569, %v568
    %v631 = vpack.c.b16 %v571, %v570
    %v632 = vpack.c.b16 %v573, %v572
    %v633 = vpack.c.b16 %v575, %v574
    %v634 = vpack.c.b16 %v577, %v576
    %v635 = vpack.c.b16 %v579, %v578
    %v636 = vpack.c.b16 %v581, %v580
    %v637 = vpack.c.b16 %v583, %v582
    %v638 = vpack.c.b16 %v585, %v584
    %v639 = vpack.c.b16 %v587, %v586
    %v640 = vpack.c.b16 %v589, %v588
    %v641 = vpack.c.b16 %v591, %v590
    %v642 = vpack.c.b16 %v593, %v592
    %v643 = vpack.c.b16 %v595, %v594
    %v644 = vpack.c.b16 %v597, %v596
    %v645 = vpack.c.b16 %v599, %v598
    %v646 = vpack.c.b16 %v601, %v600
    %v647 = vpack.c.b16 %v603, %v602
    %v648 = vpack.c.b16 %v605, %v604
    %v649 = vpack.c.b16 %v607, %v606
    %v650 = vpack.c.b16 %v609, %v608
    %v651 = vpack.c.b16 %v611, %v610
    %v652 = vpack.c.b16 %v613, %v612
    %v653 = vpack.c.b16 %v615, %v614
    %v654 = vpack.c.b16 %v617, %v616
    %v655 = vpack.c.b16 %v619, %v618
    %v656 = vpack.c.b16 %v621, %v620
    %v657 = vpack.c.b16 %v623, %v622
    %v658 = vpack.c.b16 %v625, %v624
    %v659 = vpack.c.b16 %v627, %v626
    %692 = vmatpush.bf16.msra.mxu0 %v635
    %693 = vmatpush.bf16.msra.mxu0 %v634
    %694 = vmatpush.bf16.msra.mxu0 %v633
    %695 = vmatpush.bf16.msra.mxu0 %v632
    %696 = vmatpush.bf16.msra.mxu0 %v631
    %697 = vmatpush.bf16.msra.mxu0 %v630
    %698 = vmatpush.bf16.msra.mxu0 %v629
    %699 = vmatpush.bf16.msra.mxu0 %v628
    %700 = vmatmul.bf16.gmra.mxu0 %v432
    %v701 = vpop.f32.mrf.mxu0
    %v702 = vadd.f32 0.0, %v701
    %v703 = vpop.f32.mrf.mxu0
    %v704 = vadd.f32 0.0, %v703
    %705 = vdwg.mxu0
    %706 = vmatpush.bf16.msra.mxu0 %v643
    %707 = vmatpush.bf16.msra.mxu0 %v642
    %708 = vmatpush.bf16.msra.mxu0 %v641
    %709 = vmatpush.bf16.msra.mxu0 %v640
    %710 = vmatpush.bf16.msra.mxu0 %v639
    %711 = vmatpush.bf16.msra.mxu0 %v638
    %712 = vmatpush.bf16.msra.mxu0 %v637
    %713 = vmatpush.bf16.msra.mxu0 %v636
    %714 = vmatmul.bf16.gmra.mxu0 %v433
    %v715 = vpop.f32.mrf.mxu0
    %v716 = vadd.f32 %v702, %v715
    %v717 = vpop.f32.mrf.mxu0
    %v718 = vadd.f32 %v704, %v717
    %719 = vdwg.mxu0
    %720 = vmatpush.bf16.msra.mxu0 %v651
    %721 = vmatpush.bf16.msra.mxu0 %v650
    %722 = vmatpush.bf16.msra.mxu0 %v649
    %723 = vmatpush.bf16.msra.mxu0 %v648
    %724 = vmatpush.bf16.msra.mxu0 %v647
    %725 = vmatpush.bf16.msra.mxu0 %v646
    %726 = vmatpush.bf16.msra.mxu0 %v645
    %727 = vmatpush.bf16.msra.mxu0 %v644
    %728 = vmatmul.bf16.gmra.mxu0 %v434
    %v729 = vpop.f32.mrf.mxu0
    %v730 = vadd.f32 %v716, %v729
    %v731 = vpop.f32.mrf.mxu0
    %v732 = vadd.f32 %v718, %v731
    %733 = vdwg.mxu0
    %734 = vmatpush.bf16.msra.mxu0 %v659
    %735 = vmatpush.bf16.msra.mxu0 %v658
    %736 = vmatpush.bf16.msra.mxu0 %v657
    %737 = vmatpush.bf16.msra.mxu0 %v656
    %738 = vmatpush.bf16.msra.mxu0 %v655
    %739 = vmatpush.bf16.msra.mxu0 %v654
    %740 = vmatpush.bf16.msra.mxu0 %v653
    %741 = vmatpush.bf16.msra.mxu0 %v652
    %742 = vmatmul.bf16.gmra.mxu0 %v435
    %v743 = vpop.f32.mrf.mxu0
    %v744 = vadd.f32 %v730, %v743
    %v745 = vpop.f32.mrf.mxu0
    %v746 = vadd.f32 %v732, %v745
    %747 = vdwg.mxu0
    %v748 = vadd.f32 %v430, %v744
    %v749 = vadd.f32 %v431, %v746
    %750 = vst [vmem:[#allocation2] sm:$0xff] %v748
    %751 = vst [vmem:[#allocation2 + $0x8] sm:$0xff] %v749
    // Predicated region
    $region42: #{tpu_custom_call.1} parent=1 // pred_check
      %p752 = pneg %p82
    $region43: #{tpu_custom_call.1} parent=1 // pred_check_branch
      %754 = sbr.rel (%p752) target = $region45
    $region44: #{tpu_custom_call.1} parent=1 // pred_region
      %v755 = vld [vmem:[#allocation2] sm:$0xff]
      %v756 = vld [vmem:[#allocation2 + $0x8] sm:$0xff]
      %757 = vst [vmem:[#allocation11] sm:$0xff] %v755
      %758 = vst [vmem:[#allocation11 + $0x8] sm:$0xff] %v756
    $region45: #{tpu_custom_call.1} parent=1 // pred_fallthru
      _
    // Predicated region
    $region46: #{tpu_custom_call.1} parent=1 // pred_check
      _
    $region47: #{tpu_custom_call.1} parent=1 // pred_check_branch
      %760 = sbr.rel (0) target = $region49
    $region48: #{tpu_custom_call.1} parent=1 // pred_region
      %762 = vsyncadd [#allocation5], 0
      %s763 = sshll.u32 [#allocation11], 4
      %s764 = int_to_ptr.vmem [resolvable:$true] %s763
      %s765 = sshll.u32 %s5, 4
      %s766 = int_to_ptr.hbm [resolvable:$true] %s765
      %771 = dma.vmem_to_hbm [thread:$0]  %s764, 256, %s766, [#allocation5], 128, 128, 8
    $region49: #{tpu_custom_call.1} parent=1 // pred_fallthru
      _
    // Predicated region
    $region50: #{tpu_custom_call.1} parent=1 // pred_check
      _
    $region51: #{tpu_custom_call.1} parent=1 // pred_check_branch
      %773 = sbr.rel (0) target = $region53
    $region52: #{tpu_custom_call.1} parent=1 // pred_region
      %775 = dma.done [#allocation5], 256
    $region53: #{tpu_custom_call.1} parent=1 // pred_fallthru
      _
    %776 = vsyncpa [#allocation4], 1
    %777 = vsyncpa [#allocation7], 1
    %778 = vsyncpa [#allocation10], 1
    %779 = vsyncpa [#allocation5], 1

</llo_original>
